<compile_context>
chip_gen: v7x
topology: tpu7x:2x2x1
jax: 0.10.0
libtpu: 0.0.40
codegen_flags: <defaults>
</compile_context>

<pallas_src>
import functools
import math

import jax
import jax.numpy as jnp
from jax.experimental import pallas as pl
from jax.experimental.pallas import tpu as pltpu

BN_EPS = 1e-5
LANE = 128


def ffn_kernel(x_ref, w1_ref, b1_ref, w2_ref, b2_ref, wc_ref, bc_ref, o_ref):
    # Hoist all loads / broadcasts once.
    x = x_ref[...]
    w1 = w1_ref[...]
    b1 = b1_ref[...]
    w2 = w2_ref[...]
    b2 = b2_ref[...]
    wc = wc_ref[...]
    bc = bc_ref[...]

    inv_b = 1.0 / x.shape[0]

    # layer0: linear -> relu -> batchnorm (batch statistics, affine=False)
    h = jnp.dot(x, w1, preferred_element_type=jnp.float32) + b1
    h = jnp.maximum(h, 0.0)
    # single elementwise pass for the stats: mean and E[h^2]
    mean = jnp.sum(h, axis=0, keepdims=True) * inv_b
    msq = jnp.sum(h * h, axis=0, keepdims=True) * inv_b
    # clamp: E[h^2] - mean^2 can go slightly negative from f32 cancellation
    var = jnp.maximum(msq - mean * mean, 0.0)
    h = (h - mean) * jax.lax.rsqrt(var + BN_EPS)

    # layer1: linear -> tanh (no bn)
    h = jnp.dot(h, w2, preferred_element_type=jnp.float32) + b2
    h = jnp.tanh(h)

    # classifier: lane-dense (128-padded) output block -> unmasked full-lane stores
    o_ref[...] = jnp.dot(h, wc, preferred_element_type=jnp.float32) + bc


@functools.partial(jax.jit, static_argnames=("n_class",))
def ffn_forward(x, params, *, n_class):
    """x: (B, ...) -> flattened to (B, D).

    params: dict of weights/biases; wc_p / bc_p are already 128-lane padded
    (done once in make_params, not per call).  Whole forward is one jit so the
    flatten, pallas_call and final slice fuse into a single executable.
    """
    B = x.shape[0]
    x2d = x.reshape(B, -1).astype(jnp.float32)
    d0 = x2d.shape[1]
    w1, b1 = params["w1"], params["b1"]
    w2, b2 = params["w2"], params["b2"]
    wc_p, bc_p = params["wc_p"], params["bc_p"]
    w0 = w1.shape[1]
    w1dim = w2.shape[1]
    n_pad = wc_p.shape[1]

    flops = 2 * B * (d0 * w0 + w0 * w1dim + w1dim * n_pad)
    transcendentals = B * w1dim + w0  # tanh + rsqrt
    bytes_accessed = 4 * (
        x2d.size + w1.size + b1.size + w2.size + b2.size
        + wc_p.size + bc_p.size + B * n_pad
    )
    cost = pl.CostEstimate(
        flops=flops, transcendentals=transcendentals, bytes_accessed=bytes_accessed
    )

    vmem_spec = pl.BlockSpec(memory_space=pltpu.MemorySpace.VMEM)
    out_p = pl.pallas_call(
        ffn_kernel,
        out_shape=jax.ShapeDtypeStruct((B, n_pad), jnp.float32),
        in_specs=[vmem_spec] * 7,
        out_specs=vmem_spec,
        cost_estimate=cost,
    )(x2d, w1, b1, w2, b2, wc_p, bc_p)
    return out_p[:, :n_class]


def xavier_normal(key, fan_in, fan_out):
    std = math.sqrt(2.0 / (fan_in + fan_out))
    # stored as (in, out) == PyTorch (out, in) transposed
    return std * jax.random.normal(key, (fan_in, fan_out), dtype=jnp.float32)


def make_params(key, dim0, widths, n_class):
    """Build params; classifier is padded to a 128-lane multiple ONCE here."""
    k1, k2, k3 = jax.random.split(key, 3)
    w1 = xavier_normal(k1, dim0, widths[0])
    b1 = jnp.zeros((1, widths[0]), jnp.float32)
    w2 = xavier_normal(k2, widths[0], widths[1])
    b2 = jnp.zeros((1, widths[1]), jnp.float32)
    wc = xavier_normal(k3, widths[1], n_class)
    bc = jnp.zeros((1, n_class), jnp.float32)

    # One-time lane-dense padding of the classifier (zero columns beyond n_class).
    n_pad = ((n_class + LANE - 1) // LANE) * LANE
    wc_p = jnp.zeros((widths[1], n_pad), jnp.float32).at[:, :n_class].set(wc)
    bc_p = jnp.zeros((1, n_pad), jnp.float32).at[:, :n_class].set(bc)

    return dict(w1=w1, b1=b1, w2=w2, b2=b2, wc=wc, bc=bc, wc_p=wc_p, bc_p=bc_p)


def ffn_reference(x, params):
    """Plain-JAX reference mirroring the PyTorch forward."""
    B = x.shape[0]
    h = x.reshape(B, -1).astype(jnp.float32)
    h = h @ params["w1"] + params["b1"]
    h = jnp.maximum(h, 0.0)
    mean = jnp.mean(h, axis=0, keepdims=True)
    var = jnp.mean((h - mean) ** 2, axis=0, keepdims=True)
    h = (h - mean) / jnp.sqrt(var + BN_EPS)
    h = jnp.tanh(h @ params["w2"] + params["b2"])
    return h @ params["wc"] + params["bc"]


if __name__ == "__main__":
    # FFN(features=[{'width':32,'act':'relu','bn':True},
    #               {'width':32,'act':'tanh','bn':False}], dim0=16, n_class=4)
    # B=8 f32 == exactly one sublane group; no batch padding needed.
    B, dim0, widths, n_class = 8, 16, (32, 32), 4

    key = jax.random.PRNGKey(0)
    kx, kp = jax.random.split(key)
    x = jax.random.normal(kx, (B, 4, 4), dtype=jnp.float32)  # flattened to (B, 16)
    params = make_params(kp, dim0, widths, n_class)

    out = ffn_forward(x, params, n_class=n_class)
    out = jax.block_until_ready(out)

    ref = ffn_reference(x, params)
    assert out.shape == (B, n_class)
    assert jnp.allclose(out, ref, atol=1e-4, rtol=1e-4), "mismatch vs reference"

    print("KERNEL_OK")
</pallas_src>

<mosaic_0001>
module attributes {stable_mosaic.version = 11 : i64} {
  func.func @ffn_kernel(%arg0: memref<8x16xf32, #tpu.memory_space<vmem>>, %arg1: memref<16x32xf32, #tpu.memory_space<vmem>>, %arg2: memref<1x32xf32, #tpu.memory_space<vmem>>, %arg3: memref<32x32xf32, #tpu.memory_space<vmem>>, %arg4: memref<1x32xf32, #tpu.memory_space<vmem>>, %arg5: memref<32x128xf32, #tpu.memory_space<vmem>>, %arg6: memref<1x128xf32, #tpu.memory_space<vmem>>, %arg7: memref<8x128xf32, #tpu.memory_space<vmem>>) attributes {dimension_semantics = [], scalar_prefetch = 0 : i64, scratch_operands = 0 : i64, tpu.core_type = #tpu.core_type<tc>} {
    %c0 = arith.constant 0 : index
    %c0_0 = arith.constant 0 : index
    %0 = vector.load %arg0[%c0, %c0_0] : memref<8x16xf32, #tpu.memory_space<vmem>>, vector<8x16xf32>
    %c0_1 = arith.constant 0 : index
    %c0_2 = arith.constant 0 : index
    %1 = vector.load %arg1[%c0_1, %c0_2] : memref<16x32xf32, #tpu.memory_space<vmem>>, vector<16x32xf32>
    %c0_3 = arith.constant 0 : index
    %c0_4 = arith.constant 0 : index
    %2 = vector.load %arg2[%c0_3, %c0_4] : memref<1x32xf32, #tpu.memory_space<vmem>>, vector<1x32xf32>
    %c0_5 = arith.constant 0 : index
    %c0_6 = arith.constant 0 : index
    %3 = vector.load %arg3[%c0_5, %c0_6] : memref<32x32xf32, #tpu.memory_space<vmem>>, vector<32x32xf32>
    %c0_7 = arith.constant 0 : index
    %c0_8 = arith.constant 0 : index
    %4 = vector.load %arg4[%c0_7, %c0_8] : memref<1x32xf32, #tpu.memory_space<vmem>>, vector<1x32xf32>
    %c0_9 = arith.constant 0 : index
    %c0_10 = arith.constant 0 : index
    %5 = vector.load %arg5[%c0_9, %c0_10] : memref<32x128xf32, #tpu.memory_space<vmem>>, vector<32x128xf32>
    %c0_11 = arith.constant 0 : index
    %c0_12 = arith.constant 0 : index
    %6 = vector.load %arg6[%c0_11, %c0_12] : memref<1x128xf32, #tpu.memory_space<vmem>>, vector<1x128xf32>
    %cst = arith.constant dense<0.000000e+00> : vector<8x32xf32>
    %7 = tpu.matmul %0, %1, %cst {dimension_numbers = #tpu.dot_dimension_numbers<[1], [0], [0], [1], [0, 0, 1, 1], [], []>} : vector<8x16xf32>, vector<16x32xf32>, vector<8x32xf32> -> vector<8x32xf32>
    %8 = vector.broadcast %2 : vector<1x32xf32> to vector<8x32xf32>
    %9 = arith.addf %7, %8 : vector<8x32xf32>
    %cst_13 = arith.constant 0.000000e+00 : f32
    %10 = vector.broadcast %cst_13 : f32 to vector<8x32xf32>
    %11 = arith.maximumf %9, %10 : vector<8x32xf32>
    %cst_14 = arith.constant dense<0.000000e+00> : vector<32xf32>
    %12 = vector.multi_reduction <add>, %11, %cst_14 [0] : vector<8x32xf32> to vector<32xf32>
    %13 = vector.shape_cast %12 : vector<32xf32> to vector<1x32xf32>
    %cst_15 = arith.constant 1.250000e-01 : f32
    %14 = vector.broadcast %cst_15 : f32 to vector<1x32xf32>
    %15 = arith.mulf %13, %14 : vector<1x32xf32>
    %16 = arith.mulf %11, %11 : vector<8x32xf32>
    %cst_16 = arith.constant dense<0.000000e+00> : vector<32xf32>
    %17 = vector.multi_reduction <add>, %16, %cst_16 [0] : vector<8x32xf32> to vector<32xf32>
    %18 = vector.shape_cast %17 : vector<32xf32> to vector<1x32xf32>
    %cst_17 = arith.constant 1.250000e-01 : f32
    %19 = vector.broadcast %cst_17 : f32 to vector<1x32xf32>
    %20 = arith.mulf %18, %19 : vector<1x32xf32>
    %21 = arith.mulf %15, %15 : vector<1x32xf32>
    %22 = arith.subf %20, %21 : vector<1x32xf32>
    %cst_18 = arith.constant 0.000000e+00 : f32
    %23 = vector.broadcast %cst_18 : f32 to vector<1x32xf32>
    %24 = arith.maximumf %22, %23 : vector<1x32xf32>
    %25 = vector.broadcast %15 : vector<1x32xf32> to vector<8x32xf32>
    %26 = arith.subf %11, %25 : vector<8x32xf32>
    %cst_19 = arith.constant 9.99999974E-6 : f32
    %27 = vector.broadcast %cst_19 : f32 to vector<1x32xf32>
    %28 = arith.addf %24, %27 : vector<1x32xf32>
    %29 = math.rsqrt %28 : vector<1x32xf32>
    %30 = vector.broadcast %29 : vector<1x32xf32> to vector<8x32xf32>
    %31 = arith.mulf %26, %30 : vector<8x32xf32>
    %cst_20 = arith.constant dense<0.000000e+00> : vector<8x32xf32>
    %32 = tpu.matmul %31, %3, %cst_20 {dimension_numbers = #tpu.dot_dimension_numbers<[1], [0], [0], [1], [0, 0, 1, 1], [], []>} : vector<8x32xf32>, vector<32x32xf32>, vector<8x32xf32> -> vector<8x32xf32>
    %33 = vector.broadcast %4 : vector<1x32xf32> to vector<8x32xf32>
    %34 = arith.addf %32, %33 : vector<8x32xf32>
    %35 = math.tanh %34 : vector<8x32xf32>
    %cst_21 = arith.constant dense<0.000000e+00> : vector<8x128xf32>
    %36 = tpu.matmul %35, %5, %cst_21 {dimension_numbers = #tpu.dot_dimension_numbers<[1], [0], [0], [1], [0, 0, 1, 1], [], []>} : vector<8x32xf32>, vector<32x128xf32>, vector<8x128xf32> -> vector<8x128xf32>
    %37 = vector.broadcast %6 : vector<1x128xf32> to vector<8x128xf32>
    %38 = arith.addf %36, %37 : vector<8x128xf32>
    %c0_22 = arith.constant 0 : index
    %c0_23 = arith.constant 0 : index
    %39 = vector.load %arg7[%c0_22, %c0_23] : memref<8x128xf32, #tpu.memory_space<vmem>>, vector<8x128xf32>
    tpu.vector_store %arg7[%c0_22, %c0_23], %38 {strides = array<i32>} : memref<8x128xf32, #tpu.memory_space<vmem>>, vector<8x128xf32>,
    return
  }
}

</mosaic_0001>

<llo_original>
// kernel: ffn_forward.1
$region0: #{ffn_forward.1}
  #allocation0 [shape = 'u32[]', space=smem, size = 0x4, offset = 0x4, fixed_abs, tag = 'smem constant byte address 0x4 - core index']
  #allocation1 [shape = 'u32[144,128]{1,0:T(1,128)}', space=vmem, size = 0x12000, scoped, tag = 'internal scratch']
  %s0 = inlined_call_operand.vmem [shape: f32[8,16], index: 0, kind: input, shape index: {}]
  %s1 = inlined_call_operand.hbm [shape: f32[16,32], index: 1, kind: input, shape index: {}]
  %s2 = inlined_call_operand.vmem [shape: f32[1,32], index: 2, kind: input, shape index: {}]
  %s3 = inlined_call_operand.vmem [shape: f32[32,32], index: 3, kind: input, shape index: {}]
  %s4 = inlined_call_operand.vmem [shape: f32[1,32], index: 4, kind: input, shape index: {}]
  %s5 = inlined_call_operand.hbm [shape: f32[32,128], index: 5, kind: input, shape index: {}]
  %s6 = inlined_call_operand.vmem [shape: f32[1,128], index: 6, kind: input, shape index: {}]
  %s7 = inlined_call_operand.vmem [shape: f32[8,128], index: 7, kind: output, shape index: {}]
  %s8 = sld [smem:[#allocation0]]
  $region46: #{ffn_forward.1} parent=0
    _
  %s10 = ssub.s32 1, %s8
  %s11 = scalar_select 0, %s10, %s8
  $region1: #{ffn_forward.1} parent=0
    #allocation2 [shape = 'u8[8192]{0}', space=vmem, size = 0x2000, scoped, tag = 'input window, operand 1, single buffered']
    #allocation3 [shape = 's32[1]{0}', space=sflag, size = 0x4, scoped, tag = 'scoped memory for ffn_forward.1']
    #allocation4 [shape = 'u8[16384]{0}', space=vmem, size = 0x4000, scoped, tag = 'input window, operand 5, single buffered']
    #allocation5 [shape = 's32[1]{0}', space=sflag, size = 0x4, scoped, tag = 'scoped memory for ffn_forward.1']
    %12 = vsyncpa [#allocation3], 0
    %13 = vsyncpa [#allocation5], 0
    // Predicated region
    $region2: #{ffn_forward.1} parent=1 // pred_check
      _
    $region3: #{ffn_forward.1} parent=1 // pred_check_branch
      %15 = sbr.rel (0) target = $region5
    $region4: #{ffn_forward.1} parent=1 // pred_region
      _
    $region5: #{ffn_forward.1} parent=1 // pred_fallthru
      _
    // Predicated region
    $region6: #{ffn_forward.1} parent=1 // pred_check
      _
    $region7: #{ffn_forward.1} parent=1 // pred_check_branch
      %17 = sbr.rel (0) target = $region9
    $region8: #{ffn_forward.1} parent=1 // pred_region
      %s19 = ssub.s32 256, 256
      %20 = vsyncadd [#allocation3], %s19
      %s21 = sshll.u32 [#allocation2], 4
      %s22 = int_to_ptr.vmem [resolvable:$true] %s21
      %27 = dma.hbm_to_vmem [thread:$0]  %s1, 256, %s22, [#allocation3], 128, 128, 8
    $region9: #{ffn_forward.1} parent=1 // pred_fallthru
      _
    // Predicated region
    $region10: #{ffn_forward.1} parent=1 // pred_check
      _
    $region11: #{ffn_forward.1} parent=1 // pred_check_branch
      %29 = sbr.rel (0) target = $region13
    $region12: #{ffn_forward.1} parent=1 // pred_region
      _
    $region13: #{ffn_forward.1} parent=1 // pred_fallthru
      _
    // Predicated region
    $region14: #{ffn_forward.1} parent=1 // pred_check
      _
    $region15: #{ffn_forward.1} parent=1 // pred_check_branch
      %31 = sbr.rel (0) target = $region17
    $region16: #{ffn_forward.1} parent=1 // pred_region
      _
    $region17: #{ffn_forward.1} parent=1 // pred_fallthru
      _
    // Predicated region
    $region18: #{ffn_forward.1} parent=1 // pred_check
      _
    $region19: #{ffn_forward.1} parent=1 // pred_check_branch
      %33 = sbr.rel (0) target = $region21
    $region20: #{ffn_forward.1} parent=1 // pred_region
      _
    $region21: #{ffn_forward.1} parent=1 // pred_fallthru
      _
    // Predicated region
    $region22: #{ffn_forward.1} parent=1 // pred_check
      _
    $region23: #{ffn_forward.1} parent=1 // pred_check_branch
      %35 = sbr.rel (0) target = $region25
    $region24: #{ffn_forward.1} parent=1 // pred_region
      %s37 = ssub.s32 512, 512
      %38 = vsyncadd [#allocation5], %s37
      %s39 = sshll.u32 [#allocation4], 4
      %s40 = int_to_ptr.vmem [resolvable:$true] %s39
      %45 = dma.hbm_to_vmem [thread:$0]  %s5, 512, %s40, [#allocation5], 128, 128, 8
    $region25: #{ffn_forward.1} parent=1 // pred_fallthru
      _
    // Predicated region
    $region26: #{ffn_forward.1} parent=1 // pred_check
      _
    $region27: #{ffn_forward.1} parent=1 // pred_check_branch
      %47 = sbr.rel (0) target = $region29
    $region28: #{ffn_forward.1} parent=1 // pred_region
      _
    $region29: #{ffn_forward.1} parent=1 // pred_fallthru
      _
    // Predicated region
    $region30: #{ffn_forward.1} parent=1 // pred_check
      _
    $region31: #{ffn_forward.1} parent=1 // pred_check_branch
      %49 = sbr.rel (0) target = $region33
    $region32: #{ffn_forward.1} parent=1 // pred_region
      %50 = dma.done [#allocation3], 256
    $region33: #{ffn_forward.1} parent=1 // pred_fallthru
      _
    // Predicated region
    $region34: #{ffn_forward.1} parent=1 // pred_check
      _
    $region35: #{ffn_forward.1} parent=1 // pred_check_branch
      %52 = sbr.rel (0) target = $region37
    $region36: #{ffn_forward.1} parent=1 // pred_region
      %53 = dma.done [#allocation5], 512
    $region37: #{ffn_forward.1} parent=1 // pred_fallthru
      _
    %v54 = vld [vmem:[%s0] sm:$0xff]
    %v55 = vld [vmem:[#allocation2] sm:$0xff]
    %v56 = vld [vmem:[#allocation2 + $0x8] sm:$0xff]
    %v57 = vld [vmem:[%s2] sm:$0x1]
    %v58 = vld [vmem:[%s3] sm:$0xff]
    %v59 = vld [vmem:[%s3 + $0x8] sm:$0xff]
    %v60 = vld [vmem:[%s3 + $0x10] sm:$0xff]
    %v61 = vld [vmem:[%s3 + $0x18] sm:$0xff]
    %v62 = vld [vmem:[%s4] sm:$0x1]
    %v63 = vld [vmem:[#allocation4] sm:$0xff]
    %v64 = vld [vmem:[#allocation4 + $0x8] sm:$0xff]
    %v65 = vld [vmem:[#allocation4 + $0x10] sm:$0xff]
    %v66 = vld [vmem:[#allocation4 + $0x18] sm:$0xff]
    %v67 = vld [vmem:[%s6] sm:$0x1]
    %v69 = vlaneseq
    %v70 = vshrl.u32 %v69, 7
    %v71 = vsub.s32 0, %v70
    %v72 = vrot.slane %v57, %v71
    %vm74 = vcmask 130048
    %v76 = vsel %vm74, %v54, 0
    %78 = vmatprep.subr.mxu0 0.0
    %79 = vmatpush1.msra.mxu0 %v55
    %80 = vmatprep.subr.mxu0 0.0
    %81 = vmatpush1.msra.mxu0 %v56
    %82 = vmatprep.subr.mxu0 0.0
    %83 = vmatpush1.msra.mxu0 0.0
    %84 = vmatprep.subr.mxu0 0.0
    %85 = vmatpush1.msra.mxu0 0.0
    %86 = vmatprep.subr.mxu0 0.0
    %87 = vmatpush1.msra.mxu0 0.0
    %88 = vmatprep.subr.mxu0 0.0
    %89 = vmatpush1.msra.mxu0 0.0
    %90 = vmatprep.subr.mxu0 0.0
    %91 = vmatpush1.msra.mxu0 0.0
    %92 = vmatprep.subr.mxu0 0.0
    %93 = vmatpush1.msra.mxu0 0.0
    %94 = vmatprep.subr.mxu0 0.0
    %95 = vmatpush1.msra.mxu0 0.0
    %96 = vmatprep.subr.mxu0 0.0
    %97 = vmatpush1.msra.mxu0 0.0
    %98 = vmatprep.subr.mxu0 0.0
    %99 = vmatpush1.msra.mxu0 0.0
    %100 = vmatprep.subr.mxu0 0.0
    %101 = vmatpush1.msra.mxu0 0.0
    %102 = vmatprep.subr.mxu0 0.0
    %103 = vmatpush1.msra.mxu0 0.0
    %104 = vmatprep.subr.mxu0 0.0
    %105 = vmatpush1.msra.mxu0 0.0
    %106 = vmatprep.subr.mxu0 0.0
    %107 = vmatpush1.msra.mxu0 0.0
    %108 = vmatprep.subr.mxu0 0.0
    %109 = vmatpush1.msra.mxu0 0.0
    %110 = vmatprep.subr.mxu0 0.0
    %111 = vmatpush1.msra.mxu0 0.0
    %112 = vmatprep.subr.mxu0 0.0
    %113 = vmatpush1.msra.mxu0 0.0
    %114 = vmatprep.subr.mxu0 0.0
    %115 = vmatpush1.msra.mxu0 0.0
    %116 = vmatprep.subr.mxu0 0.0
    %117 = vmatpush1.msra.mxu0 0.0
    %118 = vmatprep.subr.mxu0 0.0
    %119 = vmatpush1.msra.mxu0 0.0
    %120 = vmatprep.subr.mxu0 0.0
    %121 = vmatpush1.msra.mxu0 0.0
    %122 = vmatprep.subr.mxu0 0.0
    %123 = vmatpush1.msra.mxu0 0.0
    %124 = vmatprep.subr.mxu0 0.0
    %125 = vmatpush1.msra.mxu0 0.0
    %126 = vmatprep.subr.mxu0 0.0
    %127 = vmatpush1.msra.mxu0 0.0
    %128 = vmatprep.subr.mxu0 0.0
    %129 = vmatpush1.msra.mxu0 0.0
    %130 = vmatprep.subr.mxu0 0.0
    %131 = vmatpush1.msra.mxu0 0.0
    %132 = vmatprep.subr.mxu0 0.0
    %133 = vmatpush1.msra.mxu0 0.0
    %134 = vmatprep.subr.mxu0 0.0
    %135 = vmatpush1.msra.mxu0 0.0
    %136 = vmatprep.subr.mxu0 0.0
    %137 = vmatpush1.msra.mxu0 0.0
    %138 = vmatprep.subr.mxu0 0.0
    %139 = vmatpush1.msra.mxu0 0.0
    %140 = vmatprep.subr.mxu0 0.0
    %141 = vmatpush1.msra.mxu0 0.0
    %142 = vmatprep.mubr.f32.mxu0 0.0
    %143 = vmatmul.mubr.f32.gmra.mrb[0].mxu0 %v76
    %v144 = vpop.f32.mrb[0].mxu0
    %v145 = vadd.f32 %v72, %v144
    %v146 = vpop.f32.mrb[0].mxu0
    %147 = vdwg.mxu0
    %v148 = vmax.f32 %v145, 0.0
    %vm149 = vcmask 261120
    %v150 = vsel %vm149, %v148, 0.0
    %v151 = vrot.slane %v150, 4
    %v152 = vadd.f32 %v150, %v151
    %v153 = vrot.slane %v152, 2
    %v154 = vadd.f32 %v152, %v153
    %v155 = vrot.slane %v154, 1
    %v156 = vadd.f32 %v154, %v155
    %v157 = vmul.f32 %v156, 0.125
    %v158 = vmul.f32 %v148, %v148
    %v159 = vsel %vm149, %v158, 0.0
    %v160 = vrot.slane %v159, 4
    %v161 = vadd.f32 %v159, %v160
    %v162 = vrot.slane %v161, 2
    %v163 = vadd.f32 %v161, %v162
    %v164 = vrot.slane %v163, 1
    %v165 = vadd.f32 %v163, %v164
    %v166 = vmul.f32 %v165, 0.125
    %v167 = vmul.f32 %v157, %v157
    %v168 = vsub.f32 %v166, %v167
    %v169 = vmax.f32 %v168, 0.0
    %v170 = vsub.f32 %v148, %v157
    %v171 = vadd.f32 %v169, 1e-05
    %v172 = vrsqrt.pop %v171
    %v173 = vmul.f32 %v170, %v172
    %v175 = vlaneseq
    %v176 = vshrl.u32 %v175, 7
    %v177 = vsub.s32 0, %v176
    %v178 = vrot.slane %v62, %v177
    %v181 = vsel %vm149, %v173, 0
    %183 = vmatprep.subr.mxu0 0.0
    %184 = vmatpush1.msra.mxu0 %v58
    %185 = vmatprep.subr.mxu0 0.0
    %186 = vmatpush1.msra.mxu0 %v59
    %187 = vmatprep.subr.mxu0 0.0
    %188 = vmatpush1.msra.mxu0 %v60
    %189 = vmatprep.subr.mxu0 0.0
    %190 = vmatpush1.msra.mxu0 %v61
    %191 = vmatprep.subr.mxu0 0.0
    %192 = vmatpush1.msra.mxu0 0.0
    %193 = vmatprep.subr.mxu0 0.0
    %194 = vmatpush1.msra.mxu0 0.0
    %195 = vmatprep.subr.mxu0 0.0
    %196 = vmatpush1.msra.mxu0 0.0
    %197 = vmatprep.subr.mxu0 0.0
    %198 = vmatpush1.msra.mxu0 0.0
    %199 = vmatprep.subr.mxu0 0.0
    %200 = vmatpush1.msra.mxu0 0.0
    %201 = vmatprep.subr.mxu0 0.0
    %202 = vmatpush1.msra.mxu0 0.0
    %203 = vmatprep.subr.mxu0 0.0
    %204 = vmatpush1.msra.mxu0 0.0
    %205 = vmatprep.subr.mxu0 0.0
    %206 = vmatpush1.msra.mxu0 0.0
    %207 = vmatprep.subr.mxu0 0.0
    %208 = vmatpush1.msra.mxu0 0.0
    %209 = vmatprep.subr.mxu0 0.0
    %210 = vmatpush1.msra.mxu0 0.0
    %211 = vmatprep.subr.mxu0 0.0
    %212 = vmatpush1.msra.mxu0 0.0
    %213 = vmatprep.subr.mxu0 0.0
    %214 = vmatpush1.msra.mxu0 0.0
    %215 = vmatprep.subr.mxu0 0.0
    %216 = vmatpush1.msra.mxu0 0.0
    %217 = vmatprep.subr.mxu0 0.0
    %218 = vmatpush1.msra.mxu0 0.0
    %219 = vmatprep.subr.mxu0 0.0
    %220 = vmatpush1.msra.mxu0 0.0
    %221 = vmatprep.subr.mxu0 0.0
    %222 = vmatpush1.msra.mxu0 0.0
    %223 = vmatprep.subr.mxu0 0.0
    %224 = vmatpush1.msra.mxu0 0.0
    %225 = vmatprep.subr.mxu0 0.0
    %226 = vmatpush1.msra.mxu0 0.0
    %227 = vmatprep.subr.mxu0 0.0
    %228 = vmatpush1.msra.mxu0 0.0
    %229 = vmatprep.subr.mxu0 0.0
    %230 = vmatpush1.msra.mxu0 0.0
    %231 = vmatprep.subr.mxu0 0.0
    %232 = vmatpush1.msra.mxu0 0.0
    %233 = vmatprep.subr.mxu0 0.0
    %234 = vmatpush1.msra.mxu0 0.0
    %235 = vmatprep.subr.mxu0 0.0
    %236 = vmatpush1.msra.mxu0 0.0
    %237 = vmatprep.subr.mxu0 0.0
    %238 = vmatpush1.msra.mxu0 0.0
    %239 = vmatprep.subr.mxu0 0.0
    %240 = vmatpush1.msra.mxu0 0.0
    %241 = vmatprep.subr.mxu0 0.0
    %242 = vmatpush1.msra.mxu0 0.0
    %243 = vmatprep.subr.mxu0 0.0
    %244 = vmatpush1.msra.mxu0 0.0
    %245 = vmatprep.subr.mxu0 0.0
    %246 = vmatpush1.msra.mxu0 0.0
    %247 = vmatprep.mubr.f32.mxu0 0.0
    %248 = vmatmul.mubr.f32.gmra.mrb[0].mxu0 %v181
    %v249 = vpop.f32.mrb[0].mxu0
    %v250 = vadd.f32 %v178, %v249
    %v251 = vpop.f32.mrb[0].mxu0
    %252 = vdwg.mxu0
    %v253 = vtanh.pop %v250
    %v255 = vlaneseq
    %v256 = vshrl.u32 %v255, 7
    %v257 = vsub.s32 0, %v256
    %v258 = vrot.slane %v67, %v257
    %v261 = vsel %vm149, %v253, 0
    %263 = vmatprep.subr.mxu0 0.0
    %264 = vmatpush1.msra.mxu0 %v63
    %265 = vmatprep.subr.mxu0 0.0
    %266 = vmatpush1.msra.mxu0 %v64
    %267 = vmatprep.subr.mxu0 0.0
    %268 = vmatpush1.msra.mxu0 %v65
    %269 = vmatprep.subr.mxu0 0.0
    %270 = vmatpush1.msra.mxu0 %v66
    %271 = vmatprep.subr.mxu0 0.0
    %272 = vmatpush1.msra.mxu0 0.0
    %273 = vmatprep.subr.mxu0 0.0
    %274 = vmatpush1.msra.mxu0 0.0
    %275 = vmatprep.subr.mxu0 0.0
    %276 = vmatpush1.msra.mxu0 0.0
    %277 = vmatprep.subr.mxu0 0.0
    %278 = vmatpush1.msra.mxu0 0.0
    %279 = vmatprep.subr.mxu0 0.0
    %280 = vmatpush1.msra.mxu0 0.0
    %281 = vmatprep.subr.mxu0 0.0
    %282 = vmatpush1.msra.mxu0 0.0
    %283 = vmatprep.subr.mxu0 0.0
    %284 = vmatpush1.msra.mxu0 0.0
    %285 = vmatprep.subr.mxu0 0.0
    %286 = vmatpush1.msra.mxu0 0.0
    %287 = vmatprep.subr.mxu0 0.0
    %288 = vmatpush1.msra.mxu0 0.0
    %289 = vmatprep.subr.mxu0 0.0
    %290 = vmatpush1.msra.mxu0 0.0
    %291 = vmatprep.subr.mxu0 0.0
    %292 = vmatpush1.msra.mxu0 0.0
    %293 = vmatprep.subr.mxu0 0.0
    %294 = vmatpush1.msra.mxu0 0.0
    %295 = vmatprep.subr.mxu0 0.0
    %296 = vmatpush1.msra.mxu0 0.0
    %297 = vmatprep.subr.mxu0 0.0
    %298 = vmatpush1.msra.mxu0 0.0
    %299 = vmatprep.subr.mxu0 0.0
    %300 = vmatpush1.msra.mxu0 0.0
    %301 = vmatprep.subr.mxu0 0.0
    %302 = vmatpush1.msra.mxu0 0.0
    %303 = vmatprep.subr.mxu0 0.0
    %304 = vmatpush1.msra.mxu0 0.0
    %305 = vmatprep.subr.mxu0 0.0
    %306 = vmatpush1.msra.mxu0 0.0
    %307 = vmatprep.subr.mxu0 0.0
    %308 = vmatpush1.msra.mxu0 0.0
    %309 = vmatprep.subr.mxu0 0.0
    %310 = vmatpush1.msra.mxu0 0.0
    %311 = vmatprep.subr.mxu0 0.0
    %312 = vmatpush1.msra.mxu0 0.0
    %313 = vmatprep.subr.mxu0 0.0
    %314 = vmatpush1.msra.mxu0 0.0
    %315 = vmatprep.subr.mxu0 0.0
    %316 = vmatpush1.msra.mxu0 0.0
    %317 = vmatprep.subr.mxu0 0.0
    %318 = vmatpush1.msra.mxu0 0.0
    %319 = vmatprep.subr.mxu0 0.0
    %320 = vmatpush1.msra.mxu0 0.0
    %321 = vmatprep.subr.mxu0 0.0
    %322 = vmatpush1.msra.mxu0 0.0
    %323 = vmatprep.subr.mxu0 0.0
    %324 = vmatpush1.msra.mxu0 0.0
    %325 = vmatprep.subr.mxu0 0.0
    %326 = vmatpush1.msra.mxu0 0.0
    %327 = vmatprep.mubr.f32.mxu0 0.0
    %328 = vmatmul.mubr.f32.gmra.mrb[0].mxu0 %v261
    %v329 = vpop.f32.mrb[0].mxu0
    %v330 = vadd.f32 %v258, %v329
    %v331 = vpop.f32.mrb[0].mxu0
    %332 = vdwg.mxu0
    %333 = vst [vmem:[%s7] sm:$0xff] %v330
    // Predicated region
    $region38: #{ffn_forward.1} parent=1 // pred_check
      _
    $region39: #{ffn_forward.1} parent=1 // pred_check_branch
      %335 = sbr.rel (0) target = $region41
    $region40: #{ffn_forward.1} parent=1 // pred_region
      _
    $region41: #{ffn_forward.1} parent=1 // pred_fallthru
      _
    // Predicated region
    $region42: #{ffn_forward.1} parent=1 // pred_check
      _
    $region43: #{ffn_forward.1} parent=1 // pred_check_branch
      %337 = sbr.rel (0) target = $region45
    $region44: #{ffn_forward.1} parent=1 // pred_region
      _
    $region45: #{ffn_forward.1} parent=1 // pred_fallthru
      _
    %338 = vsyncpa [#allocation3], 1
    %339 = vsyncpa [#allocation5], 1

</llo_original>
